<compile_context>
chip_gen: v5e
topology: v5e:2x2
jax: 0.10.0
libtpu: 0.0.40
codegen_flags: <defaults>
</compile_context>

<pallas_src>
import functools

import jax
import jax.numpy as jnp
from jax.experimental import pallas as pl
from jax.experimental.pallas import tpu as pltpu


def _round_up(x, m):
    return -(-x // m) * m


def _cross_entropy_kernel(pred_ref, y_ref, out_ref, *, batch, tile_rows):
    i = pl.program_id(0)

    x = pred_ref[...].astype(jnp.float32)                 # (TB, C) f32 compute
    y = y_ref[...]                                        # (TB, 1) i32 labels

    # target logit z_y = pred[r, y_r]  (pure VPU/XLU; overlaps the EUP exp below)
    col = jax.lax.broadcasted_iota(jnp.int32, x.shape, 1)                 # (TB, C)
    z_y = jnp.sum(jnp.where(col == y, x, 0.0), axis=1, keepdims=True)     # (TB, 1)

    # unstabilized denominator, matching the reference's exp/sum semantics
    denom = jnp.sum(jnp.exp(x), axis=1, keepdims=True)                    # (TB, 1)

    loss = jnp.log(denom) - z_y                                           # (TB, 1)

    # mask padded batch rows out of the sum
    row = jax.lax.broadcasted_iota(jnp.int32, (tile_rows, 1), 0) + i * tile_rows
    loss = jnp.where(row < batch, loss, 0.0)

    partial = jnp.sum(loss)                                               # f32 scalar
    # lane-dense (1, 8, 128) partial-sum slab -> unmasked vreg store; the wrapper
    # reads element [i, 0, 0] of each block.
    out_ref[...] = jnp.full((1, 8, 128), partial, dtype=jnp.float32)


def my_cross_entropy(pred, y, *, tile_rows=None, max_tile_bytes=4 << 20):
    """pred: (B, C) float logits (f32 or bf16), y: (B,) int labels -> scalar f32 mean loss."""
    b, c = pred.shape
    itemsize = jnp.dtype(pred.dtype).itemsize
    sub = max(8, 32 // itemsize)                 # sublane multiple for this dtype

    if tile_rows is None:
        # keep one (TB, C) logits tile around ~4 MiB so double-buffering fits the
        # scoped-VMEM default on every chip (16 MiB v5e, 32 MiB v6e/v7x).
        rows_fit = max(sub, max_tile_bytes // max(1, c * itemsize))
        tile_rows = min(_round_up(b, sub), 1024, (rows_fit // sub) * sub)
    tb = max(sub, _round_up(tile_rows, sub))

    nt = -(-b // tb)                             # number of batch tiles
    b_pad = nt * tb
    if b_pad != b:
        pred = jnp.pad(pred, ((0, b_pad - b), (0, 0)))
        y = jnp.pad(y, (0, b_pad - b))
    y2d = y.astype(jnp.int32).reshape(b_pad, 1)

    kernel = functools.partial(_cross_entropy_kernel, batch=b, tile_rows=tb)

    partials = pl.pallas_call(
        kernel,
        out_shape=jax.ShapeDtypeStruct((nt, 8, 128), jnp.float32),
        grid=(nt,),
        in_specs=[
            pl.BlockSpec((tb, c), lambda i: (i, 0)),     # logits tile, native dtype
            pl.BlockSpec((tb, 1), lambda i: (i, 0)),     # labels tile
        ],
        out_specs=pl.BlockSpec((1, 8, 128), lambda i: (i, 0, 0)),
        compiler_params=pltpu.CompilerParams(
            dimension_semantics=("parallel",)),          # shards across v7x's 2 TCs
    )(pred, y2d)

    # TODO(synk): for vocab-scale C (>~32k) add a second, "arbitrary" class-tile grid
    # axis with a per-row denominator accumulator so per-step VMEM stays bounded.
    return jnp.sum(partials[:, 0, 0]) / jnp.float32(b)


def _reference(pred, y):
    pred = pred.astype(jnp.float32)
    z = pred[jnp.arange(pred.shape[0]), y]
    return jnp.mean(jnp.log(jnp.sum(jnp.exp(pred), axis=1)) - z)


if __name__ == "__main__":
    key = jax.random.PRNGKey(0)
    k1, k2, k3, k4 = jax.random.split(key, 4)

    # Case 1: tiny f32 example matching the module's convention (B, C) logits + (B,) labels.
    B, C = 8, 32
    pred = jax.random.normal(k1, (B, C), dtype=jnp.float32)
    y = jax.random.randint(k2, (B,), 0, C, dtype=jnp.int32)
    loss = my_cross_entropy(pred, y)
    jax.block_until_ready(loss)
    ref = _reference(pred, y)
    assert jnp.allclose(loss, ref, rtol=1e-5, atol=1e-5), (loss, ref)

    # Case 2: ragged batch + bf16 logits + forced multi-tile grid (exercises padding/masking).
    B2, C2 = 29, 384
    pred2 = jax.random.normal(k3, (B2, C2), dtype=jnp.float32).astype(jnp.bfloat16)
    y2 = jax.random.randint(k4, (B2,), 0, C2, dtype=jnp.int32)
    loss2 = my_cross_entropy(pred2, y2, tile_rows=16)
    jax.block_until_ready(loss2)
    ref2 = _reference(pred2, y2)
    assert jnp.allclose(loss2, ref2, rtol=1e-4, atol=1e-4), (loss2, ref2)

    print("KERNEL_OK")
</pallas_src>

<mosaic_0001>
module attributes {stable_mosaic.version = 11 : i64} {
  func.func @_cross_entropy_kernel(%arg0: i32, %arg1: memref<8x32xf32, #tpu.memory_space<vmem>>, %arg2: memref<8x1xi32, #tpu.memory_space<vmem>>, %arg3: memref<1x8x128xf32, #tpu.memory_space<vmem>>) attributes {dimension_semantics = [#tpu.dimension_semantics<parallel>], iteration_bounds = array<i64: 1>, scalar_prefetch = 0 : i64, scratch_operands = 0 : i64, tpu.core_type = #tpu.core_type<tc>, window_params = [{transform_indices = @transform_0, window_bounds = array<i64: 8, 32>}, {transform_indices = @transform_1, window_bounds = array<i64: 8, 1>}, {transform_indices = @transform_2, window_bounds = array<i64: 1, 8, 128>}]} {
    %c0 = arith.constant 0 : index
    %c0_0 = arith.constant 0 : index
    %0 = vector.load %arg1[%c0, %c0_0] : memref<8x32xf32, #tpu.memory_space<vmem>>, vector<8x32xf32>
    %c0_1 = arith.constant 0 : index
    %c0_2 = arith.constant 0 : index
    %1 = vector.load %arg2[%c0_1, %c0_2] : memref<8x1xi32, #tpu.memory_space<vmem>>, vector<8x1xi32>
    %2 = tpu.iota {dimensions = array<i32: 1>} : vector<8x32xi32>
    %3 = vector.broadcast %1 : vector<8x1xi32> to vector<8x32xi32>
    %4 = arith.cmpi eq, %2, %3 : vector<8x32xi32>
    %cst = arith.constant 0.000000e+00 : f32
    %5 = vector.broadcast %cst : f32 to vector<8x32xf32>
    %6 = arith.select %4, %0, %5 : vector<8x32xi1>, vector<8x32xf32>
    %cst_3 = arith.constant dense<0.000000e+00> : vector<8xf32>
    %7 = vector.multi_reduction <add>, %6, %cst_3 [1] : vector<8x32xf32> to vector<8xf32>
    %8 = vector.shape_cast %7 : vector<8xf32> to vector<8x1xf32>
    %9 = math.exp %0 : vector<8x32xf32>
    %cst_4 = arith.constant dense<0.000000e+00> : vector<8xf32>
    %10 = vector.multi_reduction <add>, %9, %cst_4 [1] : vector<8x32xf32> to vector<8xf32>
    %11 = vector.shape_cast %10 : vector<8xf32> to vector<8x1xf32>
    %12 = math.log %11 : vector<8x1xf32>
    %13 = arith.subf %12, %8 : vector<8x1xf32>
    %14 = tpu.iota {dimensions = array<i32: 0>} : vector<8x1xi32>
    %c8_i32 = arith.constant 8 : i32
    %15 = arith.muli %arg0, %c8_i32 : i32
    %16 = vector.broadcast %15 : i32 to vector<8x1xi32>
    %17 = arith.addi %14, %16 : vector<8x1xi32>
    %c8_i32_5 = arith.constant 8 : i32
    %18 = vector.broadcast %c8_i32_5 : i32 to vector<8x1xi32>
    %19 = arith.cmpi slt, %17, %18 : vector<8x1xi32>
    %cst_6 = arith.constant 0.000000e+00 : f32
    %20 = vector.broadcast %cst_6 : f32 to vector<8x1xf32>
    %21 = arith.select %19, %13, %20 : vector<8x1xi1>, vector<8x1xf32>
    %22 = vector.shape_cast %21 : vector<8x1xf32> to vector<1x8x1xf32>
    %cst_7 = arith.constant dense<0.000000e+00> : vector<1xf32>
    %23 = vector.multi_reduction <add>, %22, %cst_7 [1, 2] : vector<1x8x1xf32> to vector<1xf32>
    %24 = vector.shape_cast %23 : vector<1xf32> to vector<1x1x1xf32>
    %25 = vector.extract %24[0, 0, 0] : f32 from vector<1x1x1xf32>
    %26 = vector.broadcast %25 : f32 to vector<1x8x128xf32>
    %c0_8 = arith.constant 0 : index
    %c0_9 = arith.constant 0 : index
    %c0_10 = arith.constant 0 : index
    %27 = vector.load %arg3[%c0_8, %c0_9, %c0_10] : memref<1x8x128xf32, #tpu.memory_space<vmem>>, vector<1x8x128xf32>
    tpu.vector_store %arg3[%c0_8, %c0_9, %c0_10], %26 {strides = array<i32>} : memref<1x8x128xf32, #tpu.memory_space<vmem>>, vector<1x8x128xf32>,
    return
  }
  func.func @transform_0(%arg0: i32) -> (i32, i32) {
    %c0_i32 = arith.constant 0 : i32
    %c0_i32_0 = arith.constant 0 : i32
    return %arg0, %c0_i32 : i32, i32
  }
  func.func @transform_1(%arg0: i32) -> (i32, i32) {
    %c0_i32 = arith.constant 0 : i32
    %c0_i32_0 = arith.constant 0 : i32
    return %arg0, %c0_i32 : i32, i32
  }
  func.func @transform_2(%arg0: i32) -> (i32, i32, i32) {
    %c0_i32 = arith.constant 0 : i32
    %c0_i32_0 = arith.constant 0 : i32
    %c0_i32_1 = arith.constant 0 : i32
    return %arg0, %c0_i32, %c0_i32_0 : i32, i32, i32
  }
}

</mosaic_0001>

<llo_original>
// kernel: tpu_custom_call.1
$region0: #{tpu_custom_call.1}
  #allocation0 [shape = 'u32[]', space=smem, size = 0x4, offset = 0x4, fixed_abs, tag = 'smem constant byte address 0x4 - core index']
  #allocation1 [shape = 'u32[72,128]{1,0:T(1,128)}', space=vmem, size = 0x9000, scoped, tag = 'internal scratch']
  %s0 = inlined_call_operand.vmem [shape: f32[8,32], index: 0, kind: input, shape index: {}]
  %s1 = inlined_call_operand.vmem [shape: s32[8,1], index: 1, kind: input, shape index: {}]
  %s2 = inlined_call_operand.hbm [shape: f32[1,8,128], index: 2, kind: output, shape index: {}]
  %s3 = sld [smem:[#allocation0]]
  $region18: #{tpu_custom_call.1} parent=0
    _
  %s5 = ssub.s32 1, %s3
  %s6 = scalar_select 0, %s5, %s3
  $region1: #{tpu_custom_call.1} parent=0
    #allocation2 [shape = 'u8[4096]{0}', space=vmem, size = 0x1000, scoped, tag = 'output window, operand 0, single buffered']
    #allocation3 [shape = 's32[1]{0}', space=sflag, size = 0x4, scoped, tag = 'scoped memory for tpu_custom_call.1']
    %7 = vsyncpa [#allocation3], 0
    // Predicated region
    $region2: #{tpu_custom_call.1} parent=1 // pred_check
      _
    $region3: #{tpu_custom_call.1} parent=1 // pred_check_branch
      %9 = sbr.rel (0) target = $region5
    $region4: #{tpu_custom_call.1} parent=1 // pred_region
      _
    $region5: #{tpu_custom_call.1} parent=1 // pred_fallthru
      _
    // Predicated region
    $region6: #{tpu_custom_call.1} parent=1 // pred_check
      _
    $region7: #{tpu_custom_call.1} parent=1 // pred_check_branch
      %11 = sbr.rel (0) target = $region9
    $region8: #{tpu_custom_call.1} parent=1 // pred_region
      _
    $region9: #{tpu_custom_call.1} parent=1 // pred_fallthru
      _
    %v12 = vld [vmem:[%s0] sm:$0xff]
    %v13 = vld [vmem:[%s1] sm:$0xff]
    %v14 = vlaneseq
    %v15 = vand.u32 %v14, 127
    %16 = vset.pattern.permute.xlu0 0
    %17 = vperm.xlu0 %16, %v13
    %v18 = vpop.permute.xlu0 %17
    %vm19 = vcmp.eq.s32.totalorder %v15, %v18
    %v20 = vsel %vm19, %v12, 0.0
    %vm21 = vcmask 261120
    %v22 = vsel %vm21, %v20, 0.0
    %23 = vadd.xlane.f32.xlu0 %v22
    %v24 = vpop.xlane.xlu0 %23
    %v25 = vmul.f32 %v12, 1.442695
    %v26 = vpow.pop %v25
    %v27 = vsel %vm21, %v26, 0.0
    %28 = vadd.xlane.f32.xlu0 %v27
    %v29 = vpop.xlane.xlu0 %28
    %v30 = vlog2.pop %v29
    %v31 = vmul.f32 %v30, 0.6931472
    %v32 = vsub.f32 %v31, %v24
    %v33 = vlaneseq
    %v34 = vshrl.u32 %v33, 7
    %s35 = smul.u32 0, 8
    %v36 = vstv %s35
    %v37 = vadd.s32 %v34, %v36
    %vm38 = vcmp.lt.s32.totalorder %v37, 8
    %v39 = vsel %vm38, %v32, 0.0
    %vm40 = vcmask 7168
    %v41 = vsel %vm40, %v39, 0.0
    %42 = vadd.xlane.f32.xlu0 %v41
    %v43 = vpop.xlane.xlu0 %42
    %v44 = vrot.slane %v43, 4
    %v45 = vadd.f32 %v43, %v44
    %v46 = vrot.slane %v45, 2
    %v47 = vadd.f32 %v45, %v46
    %v48 = vrot.slane %v47, 1
    %v49 = vadd.f32 %v47, %v48
    %s50 = vtos %v49
    %v51 = vstv %s50
    %52 = vst [vmem:[#allocation2] sm:$0xff] %v51
    // Predicated region
    $region10: #{tpu_custom_call.1} parent=1 // pred_check
      _
    $region11: #{tpu_custom_call.1} parent=1 // pred_check_branch
      %54 = sbr.rel (0) target = $region13
    $region12: #{tpu_custom_call.1} parent=1 // pred_region
      %56 = vsyncadd [#allocation3], 0
      %s58 = sshll.u32 [#allocation2], 4
      %s59 = int_to_ptr.vmem [resolvable:$true] %s58
      %s60 = sshll.u32 %s2, 4
      %s61 = int_to_ptr.hbm [resolvable:$true] %s60
      %63 = dma.vmem_to_hbm [thread:$0]  %s59, 128, %s61, [#allocation3]
    $region13: #{tpu_custom_call.1} parent=1 // pred_fallthru
      _
    // Predicated region
    $region14: #{tpu_custom_call.1} parent=1 // pred_check
      _
    $region15: #{tpu_custom_call.1} parent=1 // pred_check_branch
      %65 = sbr.rel (0) target = $region17
    $region16: #{tpu_custom_call.1} parent=1 // pred_region
      %67 = dma.done [#allocation3], 128
    $region17: #{tpu_custom_call.1} parent=1 // pred_fallthru
      _
    %68 = vsyncpa [#allocation3], 1

</llo_original>
